<compile_context>
chip_gen: v6e
topology: v6e:2x2x1
jax: 0.10.0
libtpu: 0.0.40
codegen_flags: <defaults>
</compile_context>

<pallas_src>
import functools

import jax
import jax.numpy as jnp
import numpy as np
from jax.experimental import pallas as pl
from jax.experimental.pallas import tpu as pltpu


def _round_up(x, m):
    return ((x + m - 1) // m) * m


def _mlp_kernel_t(xT_ref, w1_ref, b1_ref, w2_ref, b2_ref, w3_ref, b3_ref,
                  outT_ref):
    """Fused 3-layer MLP in transposed (feature-major, batch-on-lanes) layout.

    xT_ref:   (dim_in, bm)      MXU dtype (f32 or bf16)
    w*_ref:   torch layout (out_features, in_features), MXU dtype
    b*_ref:   (out_features, 1) f32
    outT_ref: (2*dim_out, bm)   f32
    Matmuls accumulate in f32; bias-add + ReLU run in f32 on the VPU.
    """
    xT = xT_ref[...]

    # layer 1: (internal, dim_in) @ (dim_in, bm) -> (internal, bm)
    h = jnp.dot(w1_ref[...], xT, preferred_element_type=jnp.float32)
    h = jnp.maximum(h + b1_ref[...], 0.0)
    h = h.astype(w2_ref.dtype)          # no-op in the pure-f32 path

    # layer 2: (internal, internal) @ (internal, bm)
    h = jnp.dot(w2_ref[...], h, preferred_element_type=jnp.float32)
    h = jnp.maximum(h + b2_ref[...], 0.0)
    h = h.astype(w3_ref.dtype)

    # layer 3: (2*dim_out, internal) @ (internal, bm); chunk happens in wrapper
    out = jnp.dot(w3_ref[...], h, preferred_element_type=jnp.float32)
    outT_ref[...] = (out + b3_ref[...]).astype(outT_ref.dtype)


def _choose_tiling(B, dim_in, internal, two_dout, x_itemsize, *, bm_max):
    """Pick (bm, grid_steps).  Batch lives on the lane axis -> bm % 128 == 0."""
    lane = 128
    B_up = _round_up(max(B, 1), lane)
    # Resident VMEM bytes per batch element inside one grid step.
    per_row = (2 * x_itemsize * dim_in            # x tile (double-buffered)
               + 2 * 4 * two_dout                 # out tile (double-buffered)
               + 2 * (4 + x_itemsize) * internal  # h1/h2 f32 + MXU-dtype copies
               + 4 * two_dout)                    # f32 matmul result pre-store
    act_budget = 6 << 20                          # a few MiB of activations/step
    bm_cap = max(lane,
                 min(bm_max, (act_budget // max(per_row, 1)) // lane * lane))
    steps = pl.cdiv(B_up, bm_cap)
    # v7x has 2 TensorCores: prefer >= 2 grid steps for "parallel" sharding,
    # but only when it does not inflate padding (clean split or very large B).
    if steps == 1 and B_up >= 2 * lane and (B_up % (2 * lane) == 0 or B >= 1024):
        steps = 2
    bm = _round_up(pl.cdiv(B_up, steps), lane)
    return bm, steps


@functools.partial(jax.jit, static_argnames=("bm_max", "mxu_dtype"))
def simple_transform_forward(x, params, *, bm_max=8192, mxu_dtype=None):
    """SimpleTransform forward pass with a fused Pallas kernel.

    x: (B, dim_in) float32.
    params (torch nn.Linear layout): w1 (internal, dim_in), b1 (internal,),
                                     w2 (internal, internal), b2 (internal,),
                                     w3 (2*dim_out, internal), b3 (2*dim_out,).
    mxu_dtype: None -> pure f32 (matches the torch module bit-for-bit-ish);
               jnp.bfloat16 -> bf16 MXU inputs with f32 accumulation
               (recommended on v5e/v6e/v7x when ~1e-2 error is acceptable).
    Returns (log_s, t), each (B, dim_out) float32.
    """
    B, dim_in = x.shape
    internal = params["w1"].shape[0]
    two_dout = params["w3"].shape[0]
    dim_out = two_dout // 2

    compute_dtype = jnp.float32 if mxu_dtype is None else mxu_dtype
    x_itemsize = jnp.dtype(compute_dtype).itemsize

    bm, steps = _choose_tiling(B, dim_in, internal, two_dout, x_itemsize,
                               bm_max=bm_max)
    B_pad = bm * steps

    # Wrapper-side layout work (cheap XLA ops; keeps XLU ops out of the kernel):
    # cast x/weights ONCE, transpose x so batch lands on lanes, pad the batch.
    xT = x.astype(compute_dtype).T                          # (dim_in, B)
    if B_pad != B:
        xT = jnp.pad(xT, ((0, 0), (0, B_pad - B)))
    w1 = params["w1"].astype(compute_dtype)
    w2 = params["w2"].astype(compute_dtype)
    w3 = params["w3"].astype(compute_dtype)
    b1 = params["b1"].astype(jnp.float32).reshape(internal, 1)
    b2 = params["b2"].astype(jnp.float32).reshape(internal, 1)
    b3 = params["b3"].astype(jnp.float32).reshape(two_dout, 1)

    # Resident weights/biases: constant block index, single-buffered (Buffered(1)
    # halves weight VMEM residency vs the default double-buffering; matters on
    # v7x's 64 MiB VMEM for large `internal`).
    def resident(shape):
        return pl.BlockSpec(shape, lambda i: (0, 0),
                            pipeline_mode=pl.Buffered(1))

    flops = 2 * B_pad * (dim_in * internal + internal * internal
                         + internal * two_dout)
    bytes_accessed = (x_itemsize * B_pad * dim_in + 4 * B_pad * two_dout
                      + x_itemsize * (internal * dim_in + internal * internal
                                      + two_dout * internal)
                      + 4 * (2 * internal + two_dout))

    # VMEM accounting: single-buffered weights (+ f32 biases), double-buffered
    # x/out tiles, f32 activations + MXU-dtype copies.
    weight_bytes = (x_itemsize * (internal * dim_in + internal * internal
                                  + two_dout * internal)
                    + 4 * (2 * internal + two_dout))
    io_bytes = 2 * bm * (x_itemsize * dim_in + 4 * two_dout)
    act_bytes = bm * (2 * (4 + x_itemsize) * internal + 4 * two_dout)
    need = weight_bytes + io_bytes + act_bytes
    if need <= (16 << 20):          # fits every generation's default scoped limit
        vmem_limit = None
    else:
        try:
            vmem_cap = pltpu.get_tpu_info().vmem_capacity_bytes
        except Exception:           # conservative fallback, valid on all chips
            vmem_cap = 64 << 20
        ceiling = (vmem_cap * 3) // 4        # leave compiler-scratch headroom
        vmem_limit = int(min(max(need + need // 2, 32 << 20), ceiling))

    outT = pl.pallas_call(
        _mlp_kernel_t,
        out_shape=jax.ShapeDtypeStruct((two_dout, B_pad), jnp.float32),
        grid=(steps,),
        in_specs=[
            pl.BlockSpec((dim_in, bm), lambda i: (0, i)),      # x^T batch tile
            resident((internal, dim_in)),                      # w1
            resident((internal, 1)),                           # b1
            resident((internal, internal)),                    # w2
            resident((internal, 1)),                           # b2
            resident((two_dout, internal)),                    # w3
            resident((two_dout, 1)),                           # b3
        ],
        # Lane-dense output tile: last dim bm is a multiple of 128 -> unmasked vst.
        out_specs=pl.BlockSpec((two_dout, bm), lambda i: (0, i)),
        compiler_params=pltpu.CompilerParams(
            dimension_semantics=("parallel",),
            vmem_limit_bytes=vmem_limit),
        cost_estimate=pl.CostEstimate(flops=flops, transcendentals=0,
                                      bytes_accessed=bytes_accessed),
    )(xT, w1, b1, w2, b2, w3, b3)

    # torch.chunk(out, dim=1, chunks=2): free XLA slices + transpose back.
    log_s = outT[:dim_out, :B].T
    t = outT[dim_out:, :B].T
    return log_s, t


def init_params(dim_in, dim_out, inflate_coef=1, *, zero_init=True, key=None):
    """Parameters in torch nn.Linear layout: weight (out, in), bias (out,).

    SimpleTransform.__init__ zeroes every Linear's weight and bias; that is
    reproduced with zero_init=True.  zero_init=False produces deterministic
    non-zero weights purely to exercise/verify the fused-kernel math.
    """
    internal = int(dim_in * inflate_coef)
    shapes = {
        "w1": (internal, dim_in), "b1": (internal,),
        "w2": (internal, internal), "b2": (internal,),
        "w3": (dim_out * 2, internal), "b3": (dim_out * 2,),
    }
    if zero_init:
        return {k: jnp.zeros(s, jnp.float32) for k, s in shapes.items()}
    keys = jax.random.split(key, len(shapes))
    return {k: 0.1 * jax.random.normal(kk, s, jnp.float32)
            for kk, (k, s) in zip(keys, shapes.items())}


def reference_forward(x, params):
    h1 = jnp.maximum(x @ params["w1"].T + params["b1"], 0.0)
    h2 = jnp.maximum(h1 @ params["w2"].T + params["b2"], 0.0)
    out = h2 @ params["w3"].T + params["b3"]
    d = out.shape[1] // 2
    return out[:, :d], out[:, d:]


if __name__ == "__main__":
    # Small shapes consistent with the module: flat feature vectors.
    B, dim_in, dim_out, inflate_coef = 16, 16, 8, 1
    key = jax.random.PRNGKey(0)
    kx, kw, kx2 = jax.random.split(key, 3)
    x = jax.random.normal(kx, (B, dim_in), jnp.float32)

    # 1) Exact module semantics: all Linear layers zero-initialized.
    params_zero = init_params(dim_in, dim_out, inflate_coef, zero_init=True)
    log_s, t = simple_transform_forward(x, params_zero)
    jax.block_until_ready((log_s, t))
    ref_ls, ref_t = reference_forward(x, params_zero)
    np.testing.assert_allclose(np.asarray(log_s), np.asarray(ref_ls), atol=1e-6)
    np.testing.assert_allclose(np.asarray(t), np.asarray(ref_t), atol=1e-6)

    # 2) Non-zero deterministic weights to verify the fused MLP math (f32).
    params_rand = init_params(dim_in, dim_out, inflate_coef,
                              zero_init=False, key=kw)
    log_s2, t2 = simple_transform_forward(x, params_rand)
    jax.block_until_ready((log_s2, t2))
    ref_ls2, ref_t2 = reference_forward(x, params_rand)
    np.testing.assert_allclose(np.asarray(log_s2), np.asarray(ref_ls2),
                               rtol=1e-5, atol=1e-5)
    np.testing.assert_allclose(np.asarray(t2), np.asarray(ref_t2),
                               rtol=1e-5, atol=1e-5)

    # 3) bf16 MXU path (recommended perf mode) with f32 accumulation.
    log_s3, t3 = simple_transform_forward(x, params_rand,
                                          mxu_dtype=jnp.bfloat16)
    jax.block_until_ready((log_s3, t3))
    np.testing.assert_allclose(np.asarray(log_s3), np.asarray(ref_ls2),
                               rtol=5e-2, atol=5e-2)
    np.testing.assert_allclose(np.asarray(t3), np.asarray(ref_t2),
                               rtol=5e-2, atol=5e-2)

    # 4) Batch sizes exercising the padding / multi-step-grid paths.
    for b_odd in (12, 300):
        x_odd = jax.random.normal(kx2, (b_odd, dim_in), jnp.float32)
        ls4, t4 = simple_transform_forward(x_odd, params_rand)
        jax.block_until_ready((ls4, t4))
        r_ls4, r_t4 = reference_forward(x_odd, params_rand)
        np.testing.assert_allclose(np.asarray(ls4), np.asarray(r_ls4),
                                   rtol=1e-5, atol=1e-5)
        np.testing.assert_allclose(np.asarray(t4), np.asarray(r_t4),
                                   rtol=1e-5, atol=1e-5)

    print("KERNEL_OK")
</pallas_src>

<mosaic_0001>
module attributes {stable_mosaic.version = 11 : i64} {
  func.func @_mlp_kernel_t(%arg0: i32, %arg1: memref<16x128xf32, #tpu.memory_space<vmem>>, %arg2: memref<16x16xf32, #tpu.memory_space<vmem>>, %arg3: memref<16x1xf32, #tpu.memory_space<vmem>>, %arg4: memref<16x16xf32, #tpu.memory_space<vmem>>, %arg5: memref<16x1xf32, #tpu.memory_space<vmem>>, %arg6: memref<16x16xf32, #tpu.memory_space<vmem>>, %arg7: memref<16x1xf32, #tpu.memory_space<vmem>>, %arg8: memref<16x128xf32, #tpu.memory_space<vmem>>) attributes {dimension_semantics = [#tpu.dimension_semantics<parallel>], iteration_bounds = array<i64: 1>, scalar_prefetch = 0 : i64, scratch_operands = 0 : i64, tpu.core_type = #tpu.core_type<tc>, window_params = [{transform_indices = @transform_0, window_bounds = array<i64: 16, 128>}, {pipeline_mode = #tpu.pipeline_mode<synchronous>, transform_indices = @transform_1, window_bounds = array<i64: 16, 16>}, {pipeline_mode = #tpu.pipeline_mode<synchronous>, transform_indices = @transform_2, window_bounds = array<i64: 16, 1>}, {pipeline_mode = #tpu.pipeline_mode<synchronous>, transform_indices = @transform_3, window_bounds = array<i64: 16, 16>}, {pipeline_mode = #tpu.pipeline_mode<synchronous>, transform_indices = @transform_4, window_bounds = array<i64: 16, 1>}, {pipeline_mode = #tpu.pipeline_mode<synchronous>, transform_indices = @transform_5, window_bounds = array<i64: 16, 16>}, {pipeline_mode = #tpu.pipeline_mode<synchronous>, transform_indices = @transform_6, window_bounds = array<i64: 16, 1>}, {transform_indices = @transform_7, window_bounds = array<i64: 16, 128>}]} {
    %c0 = arith.constant 0 : index
    %c0_0 = arith.constant 0 : index
    %0 = vector.load %arg1[%c0, %c0_0] : memref<16x128xf32, #tpu.memory_space<vmem>>, vector<16x128xf32>
    %c0_1 = arith.constant 0 : index
    %c0_2 = arith.constant 0 : index
    %1 = vector.load %arg2[%c0_1, %c0_2] : memref<16x16xf32, #tpu.memory_space<vmem>>, vector<16x16xf32>
    %cst = arith.constant dense<0.000000e+00> : vector<16x128xf32>
    %2 = tpu.matmul %1, %0, %cst {dimension_numbers = #tpu.dot_dimension_numbers<[1], [0], [0], [1], [0, 0, 1, 1], [], []>} : vector<16x16xf32>, vector<16x128xf32>, vector<16x128xf32> -> vector<16x128xf32>
    %c0_3 = arith.constant 0 : index
    %c0_4 = arith.constant 0 : index
    %3 = vector.load %arg3[%c0_3, %c0_4] : memref<16x1xf32, #tpu.memory_space<vmem>>, vector<16x1xf32>
    %4 = vector.broadcast %3 : vector<16x1xf32> to vector<16x128xf32>
    %5 = arith.addf %2, %4 : vector<16x128xf32>
    %cst_5 = arith.constant 0.000000e+00 : f32
    %6 = vector.broadcast %cst_5 : f32 to vector<16x128xf32>
    %7 = arith.maximumf %5, %6 : vector<16x128xf32>
    %c0_6 = arith.constant 0 : index
    %c0_7 = arith.constant 0 : index
    %8 = vector.load %arg4[%c0_6, %c0_7] : memref<16x16xf32, #tpu.memory_space<vmem>>, vector<16x16xf32>
    %cst_8 = arith.constant dense<0.000000e+00> : vector<16x128xf32>
    %9 = tpu.matmul %8, %7, %cst_8 {dimension_numbers = #tpu.dot_dimension_numbers<[1], [0], [0], [1], [0, 0, 1, 1], [], []>} : vector<16x16xf32>, vector<16x128xf32>, vector<16x128xf32> -> vector<16x128xf32>
    %c0_9 = arith.constant 0 : index
    %c0_10 = arith.constant 0 : index
    %10 = vector.load %arg5[%c0_9, %c0_10] : memref<16x1xf32, #tpu.memory_space<vmem>>, vector<16x1xf32>
    %11 = vector.broadcast %10 : vector<16x1xf32> to vector<16x128xf32>
    %12 = arith.addf %9, %11 : vector<16x128xf32>
    %cst_11 = arith.constant 0.000000e+00 : f32
    %13 = vector.broadcast %cst_11 : f32 to vector<16x128xf32>
    %14 = arith.maximumf %12, %13 : vector<16x128xf32>
    %c0_12 = arith.constant 0 : index
    %c0_13 = arith.constant 0 : index
    %15 = vector.load %arg6[%c0_12, %c0_13] : memref<16x16xf32, #tpu.memory_space<vmem>>, vector<16x16xf32>
    %cst_14 = arith.constant dense<0.000000e+00> : vector<16x128xf32>
    %16 = tpu.matmul %15, %14, %cst_14 {dimension_numbers = #tpu.dot_dimension_numbers<[1], [0], [0], [1], [0, 0, 1, 1], [], []>} : vector<16x16xf32>, vector<16x128xf32>, vector<16x128xf32> -> vector<16x128xf32>
    %c0_15 = arith.constant 0 : index
    %c0_16 = arith.constant 0 : index
    %17 = vector.load %arg7[%c0_15, %c0_16] : memref<16x1xf32, #tpu.memory_space<vmem>>, vector<16x1xf32>
    %18 = vector.broadcast %17 : vector<16x1xf32> to vector<16x128xf32>
    %19 = arith.addf %16, %18 : vector<16x128xf32>
    %c0_17 = arith.constant 0 : index
    %c0_18 = arith.constant 0 : index
    %20 = vector.load %arg8[%c0_17, %c0_18] : memref<16x128xf32, #tpu.memory_space<vmem>>, vector<16x128xf32>
    tpu.vector_store %arg8[%c0_17, %c0_18], %19 {strides = array<i32>} : memref<16x128xf32, #tpu.memory_space<vmem>>, vector<16x128xf32>,
    return
  }
  func.func @transform_0(%arg0: i32) -> (i32, i32) {
    %c0_i32 = arith.constant 0 : i32
    %c0_i32_0 = arith.constant 0 : i32
    return %c0_i32, %arg0 : i32, i32
  }
  func.func @transform_1(%arg0: i32) -> (i32, i32) {
    %c0_i32 = arith.constant 0 : i32
    %c0_i32_0 = arith.constant 0 : i32
    %c0_i32_1 = arith.constant 0 : i32
    return %c0_i32, %c0_i32_0 : i32, i32
  }
  func.func @transform_2(%arg0: i32) -> (i32, i32) {
    %c0_i32 = arith.constant 0 : i32
    %c0_i32_0 = arith.constant 0 : i32
    %c0_i32_1 = arith.constant 0 : i32
    return %c0_i32, %c0_i32_0 : i32, i32
  }
  func.func @transform_3(%arg0: i32) -> (i32, i32) {
    %c0_i32 = arith.constant 0 : i32
    %c0_i32_0 = arith.constant 0 : i32
    %c0_i32_1 = arith.constant 0 : i32
    return %c0_i32, %c0_i32_0 : i32, i32
  }
  func.func @transform_4(%arg0: i32) -> (i32, i32) {
    %c0_i32 = arith.constant 0 : i32
    %c0_i32_0 = arith.constant 0 : i32
    %c0_i32_1 = arith.constant 0 : i32
    return %c0_i32, %c0_i32_0 : i32, i32
  }
  func.func @transform_5(%arg0: i32) -> (i32, i32) {
    %c0_i32 = arith.constant 0 : i32
    %c0_i32_0 = arith.constant 0 : i32
    %c0_i32_1 = arith.constant 0 : i32
    return %c0_i32, %c0_i32_0 : i32, i32
  }
  func.func @transform_6(%arg0: i32) -> (i32, i32) {
    %c0_i32 = arith.constant 0 : i32
    %c0_i32_0 = arith.constant 0 : i32
    %c0_i32_1 = arith.constant 0 : i32
    return %c0_i32, %c0_i32_0 : i32, i32
  }
  func.func @transform_7(%arg0: i32) -> (i32, i32) {
    %c0_i32 = arith.constant 0 : i32
    %c0_i32_0 = arith.constant 0 : i32
    return %c0_i32, %arg0 : i32, i32
  }
}

</mosaic_0001>

<llo_original>
// kernel: simple_transform_forward.1
$region0: #{simple_transform_forward.1}
  #allocation0 [shape = 'u32[]', space=smem, size = 0x4, offset = 0x4, fixed_abs, tag = 'smem constant byte address 0x4 - core index']
  #allocation1 [shape = 'u32[144,128]{1,0:T(1,128)}', space=vmem, size = 0x12000, scoped, tag = 'internal scratch']
  %s0 = inlined_call_operand.vmem [shape: f32[16,128], index: 0, kind: input, shape index: {}]
  %s1 = inlined_call_operand.vmem [shape: f32[16,16], index: 1, kind: input, shape index: {}]
  %s2 = inlined_call_operand.vmem [shape: f32[16,1], index: 2, kind: input, shape index: {}]
  %s3 = inlined_call_operand.vmem [shape: f32[16,16], index: 3, kind: input, shape index: {}]
  %s4 = inlined_call_operand.vmem [shape: f32[16,1], index: 4, kind: input, shape index: {}]
  %s5 = inlined_call_operand.vmem [shape: f32[16,16], index: 5, kind: input, shape index: {}]
  %s6 = inlined_call_operand.vmem [shape: f32[16,1], index: 6, kind: input, shape index: {}]
  %s7 = inlined_call_operand.vmem [shape: f32[16,128], index: 7, kind: output, shape index: {}]
  %s8 = sld [smem:[#allocation0]]
  $region38: #{simple_transform_forward.1} parent=0
    _
  %s10 = ssub.s32 1, %s8
  %s11 = scalar_select 0, %s10, %s8
  // Predicated region
  $region2: #{simple_transform_forward.1} parent=0 // pred_check
    _
  $region3: #{simple_transform_forward.1} parent=0 // pred_check_branch
    %13 = sbr.rel (0) target = $region5
  $region4: #{simple_transform_forward.1} parent=0 // pred_region
    _
  $region5: #{simple_transform_forward.1} parent=0 // pred_fallthru
    _
  // Predicated region
  $region6: #{simple_transform_forward.1} parent=0 // pred_check
    _
  $region7: #{simple_transform_forward.1} parent=0 // pred_check_branch
    %15 = sbr.rel (0) target = $region9
  $region8: #{simple_transform_forward.1} parent=0 // pred_region
    _
  $region9: #{simple_transform_forward.1} parent=0 // pred_fallthru
    _
  // Predicated region
  $region10: #{simple_transform_forward.1} parent=0 // pred_check
    _
  $region11: #{simple_transform_forward.1} parent=0 // pred_check_branch
    %17 = sbr.rel (0) target = $region13
  $region12: #{simple_transform_forward.1} parent=0 // pred_region
    _
  $region13: #{simple_transform_forward.1} parent=0 // pred_fallthru
    _
  // Predicated region
  $region14: #{simple_transform_forward.1} parent=0 // pred_check
    _
  $region15: #{simple_transform_forward.1} parent=0 // pred_check_branch
    %19 = sbr.rel (0) target = $region17
  $region16: #{simple_transform_forward.1} parent=0 // pred_region
    _
  $region17: #{simple_transform_forward.1} parent=0 // pred_fallthru
    _
  // Predicated region
  $region18: #{simple_transform_forward.1} parent=0 // pred_check
    _
  $region19: #{simple_transform_forward.1} parent=0 // pred_check_branch
    %21 = sbr.rel (0) target = $region21
  $region20: #{simple_transform_forward.1} parent=0 // pred_region
    _
  $region21: #{simple_transform_forward.1} parent=0 // pred_fallthru
    _
  // Predicated region
  $region22: #{simple_transform_forward.1} parent=0 // pred_check
    _
  $region23: #{simple_transform_forward.1} parent=0 // pred_check_branch
    %23 = sbr.rel (0) target = $region25
  $region24: #{simple_transform_forward.1} parent=0 // pred_region
    _
  $region25: #{simple_transform_forward.1} parent=0 // pred_fallthru
    _
  // Predicated region
  $region26: #{simple_transform_forward.1} parent=0 // pred_check
    _
  $region27: #{simple_transform_forward.1} parent=0 // pred_check_branch
    %25 = sbr.rel (0) target = $region29
  $region28: #{simple_transform_forward.1} parent=0 // pred_region
    _
  $region29: #{simple_transform_forward.1} parent=0 // pred_fallthru
    _
  %v26 = vld [vmem:[%s0] sm:$0xff]
  %v27 = vld [vmem:[%s0 + $0x8] sm:$0xff]
  %v28 = vld [vmem:[%s1] sm:$0xff]
  %v29 = vld [vmem:[%s1 + $0x8] sm:$0xff]
  %v30 = vld [vmem:[%s2] sm:$0xff]
  %v31 = vld [vmem:[%s2 + $0x8] sm:$0xff]
  %33 = vset.pattern.permute.xlu0 0
  %34 = vperm.xlu0 %33, %v30
  %v35 = vpop.permute.xlu0 %34
  %38 = vset.pattern.permute.xlu0 0
  %39 = vperm.xlu0 %38, %v31
  %v40 = vpop.permute.xlu0 %39
  %vm42 = vcmask 130048
  %v44 = vsel %vm42, %v28, 0
  %v47 = vsel %vm42, %v29, 0
  %49 = vmatprep.subr.mxu0 0.0
  %50 = vmatpush1.msra.mxu0 0.0
  %51 = vmatprep.subr.mxu0 0.0
  %52 = vmatpush1.msra.mxu0 0.0
  %53 = vmatprep.subr.mxu0 0.0
  %54 = vmatpush1.msra.mxu0 0.0
  %55 = vmatprep.subr.mxu0 0.0
  %56 = vmatpush1.msra.mxu0 0.0
  %57 = vmatprep.subr.mxu0 0.0
  %58 = vmatpush1.msra.mxu0 0.0
  %59 = vmatprep.subr.mxu0 0.0
  %60 = vmatpush1.msra.mxu0 0.0
  %61 = vmatprep.subr.mxu0 0.0
  %62 = vmatpush1.msra.mxu0 0.0
  %63 = vmatprep.subr.mxu0 0.0
  %64 = vmatpush1.msra.mxu0 0.0
  %65 = vmatprep.subr.mxu0 0.0
  %66 = vmatpush1.msra.mxu0 0.0
  %67 = vmatprep.subr.mxu0 0.0
  %68 = vmatpush1.msra.mxu0 0.0
  %69 = vmatprep.subr.mxu0 0.0
  %70 = vmatpush1.msra.mxu0 0.0
  %71 = vmatprep.subr.mxu0 0.0
  %72 = vmatpush1.msra.mxu0 0.0
  %73 = vmatprep.subr.mxu0 0.0
  %74 = vmatpush1.msra.mxu0 0.0
  %75 = vmatprep.subr.mxu0 0.0
  %76 = vmatpush1.msra.mxu0 0.0
  %77 = vmatprep.subr.mxu0 0.0
  %78 = vmatpush1.msra.mxu0 %v27
  %79 = vmatprep.subr.mxu0 0.0
  %80 = vmatpush1.msra.mxu0 %v26
  %81 = vmatprep.subr.mxu0 0.0
  %82 = vmatpush2.msra.mxu0 0.0
  %83 = vmatprep.subr.mxu0 0.0
  %84 = vmatpush2.msra.mxu0 0.0
  %85 = vmatprep.subr.mxu0 0.0
  %86 = vmatpush2.msra.mxu0 0.0
  %87 = vmatprep.subr.mxu0 0.0
  %88 = vmatpush2.msra.mxu0 0.0
  %89 = vmatprep.subr.mxu0 0.0
  %90 = vmatpush2.msra.mxu0 0.0
  %91 = vmatprep.subr.mxu0 0.0
  %92 = vmatpush2.msra.mxu0 0.0
  %93 = vmatprep.subr.mxu0 0.0
  %94 = vmatpush2.msra.mxu0 0.0
  %95 = vmatprep.subr.mxu0 0.0
  %96 = vmatpush2.msra.mxu0 0.0
  %97 = vmatprep.subr.mxu0 0.0
  %98 = vmatpush2.msra.mxu0 0.0
  %99 = vmatprep.subr.mxu0 0.0
  %100 = vmatpush2.msra.mxu0 0.0
  %101 = vmatprep.subr.mxu0 0.0
  %102 = vmatpush2.msra.mxu0 0.0
  %103 = vmatprep.subr.mxu0 0.0
  %104 = vmatpush2.msra.mxu0 0.0
  %105 = vmatprep.subr.mxu0 0.0
  %106 = vmatpush2.msra.mxu0 0.0
  %107 = vmatprep.subr.mxu0 0.0
  %108 = vmatpush2.msra.mxu0 0.0
  %109 = vmatprep.subr.mxu0 0.0
  %110 = vmatpush2.msra.mxu0 0.0
  %111 = vmatprep.subr.mxu0 0.0
  %112 = vmatpush2.msra.mxu0 0.0
  %113 = vmatprep.mubr.f32.mxu0 0.0
  %114 = vmatmul.mubr.f32.gmra.mxu0 %v44
  %v115 = vpop.f32.mrf.mxu0
  %v116 = vadd.f32 %v35, %v115
  %v117 = vpop.f32.mrf.mxu0
  %118 = vmatprep.mubr.f32.mxu0 0.0
  %119 = vmatmul.mubr.f32.gmra.mxu0 %v47
  %v120 = vpop.f32.mrf.mxu0
  %v121 = vadd.f32 %v40, %v120
  %v122 = vpop.f32.mrf.mxu0
  %123 = vdwg.mxu0
  %v124 = vmax.f32 %v116, 0.0
  %v125 = vmax.f32 %v121, 0.0
  %v126 = vld [vmem:[%s3] sm:$0xff]
  %v127 = vld [vmem:[%s3 + $0x8] sm:$0xff]
  %v128 = vld [vmem:[%s4] sm:$0xff]
  %v129 = vld [vmem:[%s4 + $0x8] sm:$0xff]
  %131 = vset.pattern.permute.xlu0 0
  %132 = vperm.xlu0 %131, %v128
  %v133 = vpop.permute.xlu0 %132
  %136 = vset.pattern.permute.xlu0 0
  %137 = vperm.xlu0 %136, %v129
  %v138 = vpop.permute.xlu0 %137
  %v141 = vsel %vm42, %v126, 0
  %v144 = vsel %vm42, %v127, 0
  %146 = vmatprep.subr.mxu0 0.0
  %147 = vmatpush1.msra.mxu0 0.0
  %148 = vmatprep.subr.mxu0 0.0
  %149 = vmatpush1.msra.mxu0 0.0
  %150 = vmatprep.subr.mxu0 0.0
  %151 = vmatpush1.msra.mxu0 0.0
  %152 = vmatprep.subr.mxu0 0.0
  %153 = vmatpush1.msra.mxu0 0.0
  %154 = vmatprep.subr.mxu0 0.0
  %155 = vmatpush1.msra.mxu0 0.0
  %156 = vmatprep.subr.mxu0 0.0
  %157 = vmatpush1.msra.mxu0 0.0
  %158 = vmatprep.subr.mxu0 0.0
  %159 = vmatpush1.msra.mxu0 0.0
  %160 = vmatprep.subr.mxu0 0.0
  %161 = vmatpush1.msra.mxu0 0.0
  %162 = vmatprep.subr.mxu0 0.0
  %163 = vmatpush1.msra.mxu0 0.0
  %164 = vmatprep.subr.mxu0 0.0
  %165 = vmatpush1.msra.mxu0 0.0
  %166 = vmatprep.subr.mxu0 0.0
  %167 = vmatpush1.msra.mxu0 0.0
  %168 = vmatprep.subr.mxu0 0.0
  %169 = vmatpush1.msra.mxu0 0.0
  %170 = vmatprep.subr.mxu0 0.0
  %171 = vmatpush1.msra.mxu0 0.0
  %172 = vmatprep.subr.mxu0 0.0
  %173 = vmatpush1.msra.mxu0 0.0
  %174 = vmatprep.subr.mxu0 0.0
  %175 = vmatpush1.msra.mxu0 %v125
  %176 = vmatprep.subr.mxu0 0.0
  %177 = vmatpush1.msra.mxu0 %v124
  %178 = vmatprep.subr.mxu0 0.0
  %179 = vmatpush2.msra.mxu0 0.0
  %180 = vmatprep.subr.mxu0 0.0
  %181 = vmatpush2.msra.mxu0 0.0
  %182 = vmatprep.subr.mxu0 0.0
  %183 = vmatpush2.msra.mxu0 0.0
  %184 = vmatprep.subr.mxu0 0.0
  %185 = vmatpush2.msra.mxu0 0.0
  %186 = vmatprep.subr.mxu0 0.0
  %187 = vmatpush2.msra.mxu0 0.0
  %188 = vmatprep.subr.mxu0 0.0
  %189 = vmatpush2.msra.mxu0 0.0
  %190 = vmatprep.subr.mxu0 0.0
  %191 = vmatpush2.msra.mxu0 0.0
  %192 = vmatprep.subr.mxu0 0.0
  %193 = vmatpush2.msra.mxu0 0.0
  %194 = vmatprep.subr.mxu0 0.0
  %195 = vmatpush2.msra.mxu0 0.0
  %196 = vmatprep.subr.mxu0 0.0
  %197 = vmatpush2.msra.mxu0 0.0
  %198 = vmatprep.subr.mxu0 0.0
  %199 = vmatpush2.msra.mxu0 0.0
  %200 = vmatprep.subr.mxu0 0.0
  %201 = vmatpush2.msra.mxu0 0.0
  %202 = vmatprep.subr.mxu0 0.0
  %203 = vmatpush2.msra.mxu0 0.0
  %204 = vmatprep.subr.mxu0 0.0
  %205 = vmatpush2.msra.mxu0 0.0
  %206 = vmatprep.subr.mxu0 0.0
  %207 = vmatpush2.msra.mxu0 0.0
  %208 = vmatprep.subr.mxu0 0.0
  %209 = vmatpush2.msra.mxu0 0.0
  %210 = vmatprep.mubr.f32.mxu0 0.0
  %211 = vmatmul.mubr.f32.gmra.mxu0 %v141
  %v212 = vpop.f32.mrf.mxu0
  %v213 = vadd.f32 %v133, %v212
  %v214 = vpop.f32.mrf.mxu0
  %215 = vmatprep.mubr.f32.mxu0 0.0
  %216 = vmatmul.mubr.f32.gmra.mxu0 %v144
  %v217 = vpop.f32.mrf.mxu0
  %v218 = vadd.f32 %v138, %v217
  %v219 = vpop.f32.mrf.mxu0
  %220 = vdwg.mxu0
  %v221 = vmax.f32 %v213, 0.0
  %v222 = vmax.f32 %v218, 0.0
  %v223 = vld [vmem:[%s5] sm:$0xff]
  %v224 = vld [vmem:[%s5 + $0x8] sm:$0xff]
  %v225 = vld [vmem:[%s6] sm:$0xff]
  %v226 = vld [vmem:[%s6 + $0x8] sm:$0xff]
  %228 = vset.pattern.permute.xlu0 0
  %229 = vperm.xlu0 %228, %v225
  %v230 = vpop.permute.xlu0 %229
  %233 = vset.pattern.permute.xlu0 0
  %234 = vperm.xlu0 %233, %v226
  %v235 = vpop.permute.xlu0 %234
  %v238 = vsel %vm42, %v223, 0
  %v241 = vsel %vm42, %v224, 0
  %243 = vmatprep.subr.mxu0 0.0
  %244 = vmatpush1.msra.mxu0 0.0
  %245 = vmatprep.subr.mxu0 0.0
  %246 = vmatpush1.msra.mxu0 0.0
  %247 = vmatprep.subr.mxu0 0.0
  %248 = vmatpush1.msra.mxu0 0.0
  %249 = vmatprep.subr.mxu0 0.0
  %250 = vmatpush1.msra.mxu0 0.0
  %251 = vmatprep.subr.mxu0 0.0
  %252 = vmatpush1.msra.mxu0 0.0
  %253 = vmatprep.subr.mxu0 0.0
  %254 = vmatpush1.msra.mxu0 0.0
  %255 = vmatprep.subr.mxu0 0.0
  %256 = vmatpush1.msra.mxu0 0.0
  %257 = vmatprep.subr.mxu0 0.0
  %258 = vmatpush1.msra.mxu0 0.0
  %259 = vmatprep.subr.mxu0 0.0
  %260 = vmatpush1.msra.mxu0 0.0
  %261 = vmatprep.subr.mxu0 0.0
  %262 = vmatpush1.msra.mxu0 0.0
  %263 = vmatprep.subr.mxu0 0.0
  %264 = vmatpush1.msra.mxu0 0.0
  %265 = vmatprep.subr.mxu0 0.0
  %266 = vmatpush1.msra.mxu0 0.0
  %267 = vmatprep.subr.mxu0 0.0
  %268 = vmatpush1.msra.mxu0 0.0
  %269 = vmatprep.subr.mxu0 0.0
  %270 = vmatpush1.msra.mxu0 0.0
  %271 = vmatprep.subr.mxu0 0.0
  %272 = vmatpush1.msra.mxu0 %v222
  %273 = vmatprep.subr.mxu0 0.0
  %274 = vmatpush1.msra.mxu0 %v221
  %275 = vmatprep.subr.mxu0 0.0
  %276 = vmatpush2.msra.mxu0 0.0
  %277 = vmatprep.subr.mxu0 0.0
  %278 = vmatpush2.msra.mxu0 0.0
  %279 = vmatprep.subr.mxu0 0.0
  %280 = vmatpush2.msra.mxu0 0.0
  %281 = vmatprep.subr.mxu0 0.0
  %282 = vmatpush2.msra.mxu0 0.0
  %283 = vmatprep.subr.mxu0 0.0
  %284 = vmatpush2.msra.mxu0 0.0
  %285 = vmatprep.subr.mxu0 0.0
  %286 = vmatpush2.msra.mxu0 0.0
  %287 = vmatprep.subr.mxu0 0.0
  %288 = vmatpush2.msra.mxu0 0.0
  %289 = vmatprep.subr.mxu0 0.0
  %290 = vmatpush2.msra.mxu0 0.0
  %291 = vmatprep.subr.mxu0 0.0
  %292 = vmatpush2.msra.mxu0 0.0
  %293 = vmatprep.subr.mxu0 0.0
  %294 = vmatpush2.msra.mxu0 0.0
  %295 = vmatprep.subr.mxu0 0.0
  %296 = vmatpush2.msra.mxu0 0.0
  %297 = vmatprep.subr.mxu0 0.0
  %298 = vmatpush2.msra.mxu0 0.0
  %299 = vmatprep.subr.mxu0 0.0
  %300 = vmatpush2.msra.mxu0 0.0
  %301 = vmatprep.subr.mxu0 0.0
  %302 = vmatpush2.msra.mxu0 0.0
  %303 = vmatprep.subr.mxu0 0.0
  %304 = vmatpush2.msra.mxu0 0.0
  %305 = vmatprep.subr.mxu0 0.0
  %306 = vmatpush2.msra.mxu0 0.0
  %307 = vmatprep.mubr.f32.mxu0 0.0
  %308 = vmatmul.mubr.f32.gmra.mxu0 %v238
  %v309 = vpop.f32.mrf.mxu0
  %v310 = vadd.f32 %v230, %v309
  %v311 = vpop.f32.mrf.mxu0
  %312 = vmatprep.mubr.f32.mxu0 0.0
  %313 = vmatmul.mubr.f32.gmra.mxu0 %v241
  %v314 = vpop.f32.mrf.mxu0
  %v315 = vadd.f32 %v235, %v314
  %v316 = vpop.f32.mrf.mxu0
  %317 = vdwg.mxu0
  %318 = vst [vmem:[%s7] sm:$0xff] %v310
  %319 = vst [vmem:[%s7 + $0x8] sm:$0xff] %v315
  // Predicated region
  $region30: #{simple_transform_forward.1} parent=0 // pred_check
    _
  $region31: #{simple_transform_forward.1} parent=0 // pred_check_branch
    %321 = sbr.rel (0) target = $region33
  $region32: #{simple_transform_forward.1} parent=0 // pred_region
    _
  $region33: #{simple_transform_forward.1} parent=0 // pred_fallthru
    _
  // Predicated region
  $region34: #{simple_transform_forward.1} parent=0 // pred_check
    _
  $region35: #{simple_transform_forward.1} parent=0 // pred_check_branch
    %323 = sbr.rel (0) target = $region37
  $region36: #{simple_transform_forward.1} parent=0 // pred_region
    _
  $region37: #{simple_transform_forward.1} parent=0 // pred_fallthru
    _

</llo_original>
